<compile_context>
chip_gen: v7x
topology: tpu7x:2x2x1
jax: 0.10.0
libtpu: 0.0.40
codegen_flags: <defaults>
</compile_context>

<pallas_src>
import functools

import jax
import jax.numpy as jnp
from jax.experimental import pallas as pl
from jax.experimental.pallas import tpu as pltpu

NUM_CLASSES = 10
CLASS_PAD = 128           # lane-dense output width (multiple of 128)
NEG_INF = -1e30           # bias for padded class lanes -> excluded from softmax


def net_kernel(x_ref, w_ref, b_ref, o_ref):
    # x_ref: (TB, 784) f32 ; w_ref: (784, 128) f32 ; b_ref: (1, 128) f32
    # o_ref: (TB, 128) f32
    logits = jnp.dot(x_ref[...], w_ref[...],
                     preferred_element_type=jnp.float32) + b_ref[...]
    # Padded class lanes carry a -1e30 bias, so they never win the max and
    # contribute ~0 to the exp-sum -> log_softmax over the real 10 classes only.
    m = jnp.max(logits, axis=-1, keepdims=True)
    shifted = logits - m
    lse = jnp.log(jnp.sum(jnp.exp(shifted), axis=-1, keepdims=True))
    o_ref[...] = shifted - lse


def _round_up(n, m):
    return (n + m - 1) // m * m


def _choose_batch_tiling(B, block_b):
    """Balanced batch tiling: >=2 grid steps (even count) for v7x's 2 TCs,
    tile rows a multiple of 16, cdiv-balanced so ragged B doesn't pad an
    almost-empty extra tile."""
    n_tiles = max(2, -(-B // block_b))       # at least 2 steps
    if n_tiles % 2:
        n_tiles += 1                         # even step count -> balanced TCs
    tb = min(block_b, _round_up(-(-B // n_tiles), 16))
    b_pad = tb * n_tiles
    return tb, b_pad, n_tiles


@functools.partial(jax.jit, static_argnames=("block_b",))
def net_forward(x_nchw, weight, bias, block_b=1024):
    """x_nchw: (B, 1, 28, 28) f32; weight: (10, 784) f32; bias: (10,) f32."""
    B = x_nchw.shape[0]
    K = weight.shape[1]  # 784

    TB, B_pad, n_tiles = _choose_batch_tiling(B, block_b)

    # Flatten only — keep native f32, no wrapper-side dtype materialization.
    x_flat = x_nchw.reshape(B, -1)                                 # (B, 784) f32
    if B_pad != B:
        x_flat = jnp.pad(x_flat, ((0, B_pad - B), (0, 0)))         # zero rows, sliced later

    # Lane-dense class axis: pad 10 -> 128.  Padded logits forced to -1e30 via bias.
    w_t = jnp.zeros((K, CLASS_PAD), jnp.float32).at[:, :NUM_CLASSES].set(
        weight.T.astype(jnp.float32))                              # (784, 128)
    b_pad = jnp.full((1, CLASS_PAD), NEG_INF, jnp.float32).at[0, :NUM_CLASSES].set(
        bias.astype(jnp.float32))                                  # (1, 128)

    out = pl.pallas_call(
        net_kernel,
        out_shape=jax.ShapeDtypeStruct((B_pad, CLASS_PAD), jnp.float32),
        grid_spec=pltpu.PrefetchScalarGridSpec(
            num_scalar_prefetch=0,
            grid=(n_tiles,),
            in_specs=[
                pl.BlockSpec((TB, K), lambda i: (i, 0)),            # x: pipelined tiles
                pl.BlockSpec((K, CLASS_PAD), lambda i: (0, 0)),     # W: VMEM-resident
                pl.BlockSpec((1, CLASS_PAD), lambda i: (0, 0)),     # bias: VMEM-resident
            ],
            out_specs=pl.BlockSpec((TB, CLASS_PAD), lambda i: (i, 0)),
        ),
        compiler_params=pltpu.CompilerParams(
            dimension_semantics=("parallel",),
            vmem_limit_bytes=32 * 1024 * 1024,   # safe for TB<=2048 f32 on all gens
        ),
    )(x_flat, w_t, b_pad)

    # Drop batch / class padding.
    return out[:B, :NUM_CLASSES]


if __name__ == "__main__":
    key = jax.random.PRNGKey(0)
    k_x, k_w, k_b = jax.random.split(key, 3)

    B = 2
    x = jax.random.normal(k_x, (B, 1, 28, 28), dtype=jnp.float32)

    # Deterministic init mimicking nn.Linear(784, 10): U(-1/sqrt(784), 1/sqrt(784))
    bound = 1.0 / jnp.sqrt(784.0)
    weight = jax.random.uniform(k_w, (10, 784), minval=-bound, maxval=bound,
                                dtype=jnp.float32)
    bias = jax.random.uniform(k_b, (10,), minval=-bound, maxval=bound,
                              dtype=jnp.float32)

    out = net_forward(x, weight, bias)
    out = jax.block_until_ready(out)
    assert out.shape == (B, 10)

    # Check against the f32 reference (kernel streams/accumulates in f32 now).
    ref = jax.nn.log_softmax(x.reshape(B, -1) @ weight.T + bias, axis=1)
    assert jnp.allclose(out, ref, atol=1e-2, rtol=1e-2)

    print("KERNEL_OK")
</pallas_src>

<mosaic_0001>
module attributes {stable_mosaic.version = 11 : i64} {
  func.func @net_kernel(%arg0: i32, %arg1: memref<16x784xf32, #tpu.memory_space<vmem>>, %arg2: memref<784x128xf32, #tpu.memory_space<vmem>>, %arg3: memref<1x128xf32, #tpu.memory_space<vmem>>, %arg4: memref<16x128xf32, #tpu.memory_space<vmem>>) attributes {dimension_semantics = [#tpu.dimension_semantics<parallel>], iteration_bounds = array<i64: 2>, scalar_prefetch = 0 : i64, scratch_operands = 0 : i64, tpu.core_type = #tpu.core_type<tc>, window_params = [{transform_indices = @transform_0, window_bounds = array<i64: 16, 784>}, {pipeline_mode = #tpu.pipeline_mode<synchronous>, transform_indices = @transform_1, window_bounds = array<i64: 784, 128>}, {pipeline_mode = #tpu.pipeline_mode<synchronous>, transform_indices = @transform_2, window_bounds = array<i64: 1, 128>}, {transform_indices = @transform_3, window_bounds = array<i64: 16, 128>}]} {
    %c0 = arith.constant 0 : index
    %c0_0 = arith.constant 0 : index
    %0 = vector.load %arg1[%c0, %c0_0] : memref<16x784xf32, #tpu.memory_space<vmem>>, vector<16x784xf32>
    %c0_1 = arith.constant 0 : index
    %c0_2 = arith.constant 0 : index
    %1 = vector.load %arg2[%c0_1, %c0_2] : memref<784x128xf32, #tpu.memory_space<vmem>>, vector<784x128xf32>
    %cst = arith.constant dense<0.000000e+00> : vector<16x128xf32>
    %2 = tpu.matmul %0, %1, %cst {dimension_numbers = #tpu.dot_dimension_numbers<[1], [0], [0], [1], [0, 0, 1, 1], [], []>} : vector<16x784xf32>, vector<784x128xf32>, vector<16x128xf32> -> vector<16x128xf32>
    %c0_3 = arith.constant 0 : index
    %c0_4 = arith.constant 0 : index
    %3 = vector.load %arg3[%c0_3, %c0_4] : memref<1x128xf32, #tpu.memory_space<vmem>>, vector<1x128xf32>
    %4 = vector.broadcast %3 : vector<1x128xf32> to vector<16x128xf32>
    %5 = arith.addf %2, %4 : vector<16x128xf32>
    %cst_5 = arith.constant dense<0xFF800000> : vector<16xf32>
    %6 = vector.multi_reduction <maximumf>, %5, %cst_5 [1] : vector<16x128xf32> to vector<16xf32>
    %7 = vector.shape_cast %6 : vector<16xf32> to vector<16x1xf32>
    %8 = vector.broadcast %7 : vector<16x1xf32> to vector<16x128xf32>
    %9 = arith.subf %5, %8 : vector<16x128xf32>
    %10 = math.exp %9 : vector<16x128xf32>
    %cst_6 = arith.constant dense<0.000000e+00> : vector<16xf32>
    %11 = vector.multi_reduction <add>, %10, %cst_6 [1] : vector<16x128xf32> to vector<16xf32>
    %12 = vector.shape_cast %11 : vector<16xf32> to vector<16x1xf32>
    %13 = math.log %12 : vector<16x1xf32>
    %14 = vector.broadcast %13 : vector<16x1xf32> to vector<16x128xf32>
    %15 = arith.subf %9, %14 : vector<16x128xf32>
    %c0_7 = arith.constant 0 : index
    %c0_8 = arith.constant 0 : index
    %16 = vector.load %arg4[%c0_7, %c0_8] : memref<16x128xf32, #tpu.memory_space<vmem>>, vector<16x128xf32>
    tpu.vector_store %arg4[%c0_7, %c0_8], %15 {strides = array<i32>} : memref<16x128xf32, #tpu.memory_space<vmem>>, vector<16x128xf32>,
    return
  }
  func.func @transform_0(%arg0: i32) -> (i32, i32) {
    %c0_i32 = arith.constant 0 : i32
    %c0_i32_0 = arith.constant 0 : i32
    return %arg0, %c0_i32 : i32, i32
  }
  func.func @transform_1(%arg0: i32) -> (i32, i32) {
    %c0_i32 = arith.constant 0 : i32
    %c0_i32_0 = arith.constant 0 : i32
    %c0_i32_1 = arith.constant 0 : i32
    return %c0_i32, %c0_i32_0 : i32, i32
  }
  func.func @transform_2(%arg0: i32) -> (i32, i32) {
    %c0_i32 = arith.constant 0 : i32
    %c0_i32_0 = arith.constant 0 : i32
    %c0_i32_1 = arith.constant 0 : i32
    return %c0_i32, %c0_i32_0 : i32, i32
  }
  func.func @transform_3(%arg0: i32) -> (i32, i32) {
    %c0_i32 = arith.constant 0 : i32
    %c0_i32_0 = arith.constant 0 : i32
    return %arg0, %c0_i32 : i32, i32
  }
}

</mosaic_0001>

<llo_original>
// kernel: net_forward.1
$region0: #{net_forward.1}
  #allocation0 [shape = 'u32[]', space=smem, size = 0x4, offset = 0x4, fixed_abs, tag = 'smem constant byte address 0x4 - core index']
  #allocation1 [shape = 'u32[144,128]{1,0:T(1,128)}', space=vmem, size = 0x12000, scoped, tag = 'internal scratch']
  %s0 = inlined_call_operand.vmem [shape: f32[32,784], index: 0, kind: input, shape index: {}]
  %s1 = inlined_call_operand.vmem [shape: f32[784,128], index: 1, kind: input, shape index: {}]
  %s2 = inlined_call_operand.vmem [shape: f32[1,128], index: 2, kind: input, shape index: {}]
  %s3 = inlined_call_operand.vmem [shape: f32[32,128], index: 3, kind: output, shape index: {}]
  %s4 = sld [smem:[#allocation0]]
  $region45: #{net_forward.1} parent=0
    _
  %s6 = ssub.s32 1, %s4
  %s7 = scalar_select 0, %s6, %s4
  loop: start=0, step=1, limit=4
  $region2: #{net_forward.1} parent=0 // loop_pre_header
    _
  $region3: #{net_forward.1} parent=0 // loop_header
    %s9 = sphi 0, %s13
    %p10 = scmp.ge.s32.totalorder %s9, 4
    %s19 = sphi 0, %s21
    %s22 = sphi 0, %s19
    %s23 = sphi 0, %s22
    %s39 = sphi 0, %s23
    %s43 = sphi 0, %s43
    %s45 = sphi 0, %s43
    %s46 = sphi 0, %s45
    %s60 = sphi 0, %s46
    %s64 = sphi 0, %s64
    %s66 = sphi 0, %s64
    %s67 = sphi 0, %s66
    %s81 = sphi 0, %s67
    %s87 = sphi 0, %s89
    %s90 = sphi 0, %s87
    %s91 = sphi 0, %s90
    %s107 = sphi 0, %s91
  $region4: #{net_forward.1} parent=0 // loop_header_branch
    %12 = sbr.rel (%p10) target = $region8
  $region5: #{net_forward.1} parent=0 // loop_body
    %s14 = ssub.s32 %s9, 1
    %s15 = ssub.s32 %s9, 2
    %s16 = sadd.s32 %s9, 1
    %s17 = ssub.s32 %s9, %s16
    %p18 = scmp.eq.s32.totalorder %s17, 0
    %s20 = sadd.s32 %s19, 1
    %s21 = scalar_select %p18, %s19, %s20
    %p24 = pneg %p18
    %p25 = scmp.eq.s32.totalorder %s9, 1
    %p26 = por %p24, %p25
    %p27 = scmp.ne.s32.totalorder %s19, %s22
    %p28 = scmp.eq.s32.totalorder %s9, 0
    %p29 = por %p27, %p28
    %p30 = scmp.ne.s32.totalorder %s19, %s22
    %p31 = scmp.eq.s32.totalorder %s14, 1
    %p32 = por %p30, %p31
    %p33 = scmp.ne.s32.totalorder %s22, %s23
    %p34 = scmp.eq.s32.totalorder %s14, 0
    %p35 = por %p33, %p34
    %p36 = scmp.ne.s32.totalorder %s22, %s23
    %p37 = scmp.eq.s32.totalorder %s15, 1
    %p38 = por %p36, %p37
    %p40 = scmp.ne.s32.totalorder %s23, %s39
    %p41 = scmp.eq.s32.totalorder %s15, 0
    %p42 = por %p40, %p41
    %s44 = sadd.s32 %s43, 1
    %p47 = scmp.eq.s32.totalorder %s9, 1
    %p48 = scmp.ne.s32.totalorder %s43, %s45
    %p49 = scmp.eq.s32.totalorder %s9, 0
    %p50 = por %p48, %p49
    %p51 = scmp.ne.s32.totalorder %s43, %s45
    %p52 = scmp.eq.s32.totalorder %s14, 1
    %p53 = por %p51, %p52
    %p54 = scmp.ne.s32.totalorder %s45, %s46
    %p55 = scmp.eq.s32.totalorder %s14, 0
    %p56 = por %p54, %p55
    %p57 = scmp.ne.s32.totalorder %s45, %s46
    %p58 = scmp.eq.s32.totalorder %s15, 1
    %p59 = por %p57, %p58
    %p61 = scmp.ne.s32.totalorder %s46, %s60
    %p62 = scmp.eq.s32.totalorder %s15, 0
    %p63 = por %p61, %p62
    %s65 = sadd.s32 %s64, 1
    %p68 = scmp.eq.s32.totalorder %s9, 1
    %p69 = scmp.ne.s32.totalorder %s64, %s66
    %p70 = scmp.eq.s32.totalorder %s9, 0
    %p71 = por %p69, %p70
    %p72 = scmp.ne.s32.totalorder %s64, %s66
    %p73 = scmp.eq.s32.totalorder %s14, 1
    %p74 = por %p72, %p73
    %p75 = scmp.ne.s32.totalorder %s66, %s67
    %p76 = scmp.eq.s32.totalorder %s14, 0
    %p77 = por %p75, %p76
    %p78 = scmp.ne.s32.totalorder %s66, %s67
    %p79 = scmp.eq.s32.totalorder %s15, 1
    %p80 = por %p78, %p79
    %p82 = scmp.ne.s32.totalorder %s67, %s81
    %p83 = scmp.eq.s32.totalorder %s15, 0
    %p84 = por %p82, %p83
    %s85 = ssub.s32 %s9, %s16
    %p86 = scmp.eq.s32.totalorder %s85, 0
    %s88 = sadd.s32 %s87, 1
    %s89 = scalar_select %p86, %s87, %s88
    %p92 = pneg %p86
    %p93 = scmp.eq.s32.totalorder %s9, 1
    %p94 = por %p92, %p93
    %p95 = scmp.ne.s32.totalorder %s87, %s90
    %p96 = scmp.eq.s32.totalorder %s9, 0
    %p97 = por %p95, %p96
    %p98 = scmp.ne.s32.totalorder %s87, %s90
    %p99 = scmp.eq.s32.totalorder %s14, 1
    %p100 = por %p98, %p99
    %p101 = scmp.ne.s32.totalorder %s90, %s91
    %p102 = scmp.eq.s32.totalorder %s14, 0
    %p103 = por %p101, %p102
    %p104 = scmp.ne.s32.totalorder %s90, %s91
    %p105 = scmp.eq.s32.totalorder %s15, 1
    %p106 = por %p104, %p105
    %p108 = scmp.ne.s32.totalorder %s91, %s107
    %p109 = scmp.eq.s32.totalorder %s15, 0
    %p110 = por %p108, %p109
    %p111 = scmp.le.s32.totalorder 1, %s9
    %p112 = scmp.lt.s32.totalorder %s9, 3
    %p113 = pnand %p111, %p112
    %p114 = pneg %p113
    // Predicated region
    $region9: #{net_forward.1} parent=5 // pred_check
      _
    $region10: #{net_forward.1} parent=5 // pred_check_branch
      %116 = sbr.rel (%p113) target = $region12
    $region11: #{net_forward.1} parent=5 // pred_region
      %s117 = ssub.s32 %s9, 1
      // Predicated region
      $region13: #{net_forward.1} parent=11 // pred_check
        %p118 = pneg %p56
      $region14: #{net_forward.1} parent=11 // pred_check_branch
        %120 = sbr.rel (%p118) target = $region16
      $region15: #{net_forward.1} parent=11 // pred_region
        _
      $region16: #{net_forward.1} parent=11 // pred_fallthru
        _
      // Predicated region
      $region17: #{net_forward.1} parent=11 // pred_check
        %p121 = pneg %p77
      $region18: #{net_forward.1} parent=11 // pred_check_branch
        %123 = sbr.rel (%p121) target = $region20
      $region19: #{net_forward.1} parent=11 // pred_region
        _
      $region20: #{net_forward.1} parent=11 // pred_fallthru
        _
    $region12: #{net_forward.1} parent=5 // pred_fallthru
      _
    %p124 = scmp.lt.s32.totalorder %s9, 2
    // Predicated region
    $region21: #{net_forward.1} parent=5 // pred_check
      %p125 = pneg %p124
    $region22: #{net_forward.1} parent=5 // pred_check_branch
      %127 = sbr.rel (%p125) target = $region24
    $region23: #{net_forward.1} parent=5 // pred_region
      // Predicated region
      $region25: #{net_forward.1} parent=23 // pred_check
        %p128 = pneg %p29
      $region26: #{net_forward.1} parent=23 // pred_check_branch
        %130 = sbr.rel (%p128) target = $region28
      $region27: #{net_forward.1} parent=23 // pred_region
        %s131 = smul.u32 2, %s9
        %p132 = scmp.lt.s32.totalorder %s131, 3
        %s133 = scalar_select %p132, %s131, 3
        %s134 = smul.addr %s133, 7
        %s135 = smul.addr %s134, 8
        %s136 = scalar_lea.vmem %s0, %s135
        %s137 = smul.u32 2, %s9
      $region28: #{net_forward.1} parent=23 // pred_fallthru
        _
    $region24: #{net_forward.1} parent=5 // pred_fallthru
      _
    %p138 = scmp.le.s32.totalorder 1, %s9
    %p139 = scmp.lt.s32.totalorder %s9, 3
    %p140 = pnand %p138, %p139
    %p141 = pneg %p140
    // Predicated region
    $region29: #{net_forward.1} parent=5 // pred_check
      _
    $region30: #{net_forward.1} parent=5 // pred_check_branch
      %143 = sbr.rel (%p140) target = $region32
    $region31: #{net_forward.1} parent=5 // pred_region
      %s144 = ssub.s32 %s9, 1
      %s145 = smul.u32 2, %s14
      %p146 = scmp.lt.s32.totalorder %s145, 3
      %s147 = scalar_select %p146, %s145, 3
      %s148 = smul.addr %s147, 7
      %s149 = smul.addr %s148, 8
      %s150 = scalar_lea.vmem %s0, %s149
      %p151 = pneg %p35
      %p152 = pneg %p32
      %p153 = pneg %p56
      %p154 = pneg %p53
      %p155 = pneg %p77
      %p156 = pneg %p74
      %p157 = pneg %p103
      %p158 = pneg %p100
      %s159 = smul.u32 2, %s14
      %p160 = scmp.lt.s32.totalorder %s159, 3
      %s161 = scalar_select %p160, %s159, 3
      %s162 = smul.addr %s161, 8
      %s163 = scalar_lea.vmem %s3, %s162
      %s164 = smul.u32 2, %s14
      %p165 = scmp.lt.s32.totalorder %s164, 3
      %s166 = scalar_select %p165, %s164, 3
      %s167 = smul.addr %s166, 7
      %s168 = smul.addr %s167, 8
      %s169 = scalar_lea.vmem %s0, %s168
      %s170 = smul.u32 2, %s14
      %s171 = smul.u32 2, %s14
      %p172 = scmp.lt.s32.totalorder %s171, 3
      %s173 = scalar_select %p172, %s171, 3
      %s174 = smul.addr %s173, 8
      %s175 = scalar_lea.vmem %s3, %s174
      %s176 = smul.u32 2, %s14
      %v177 = vld [vmem:[%s169] sm:$0xff]
      %v178 = vld [vmem:[%s169 + $0x8] sm:$0xff]
      %v179 = vld [vmem:[%s169 + $0x10] sm:$0xff]
      %v180 = vld [vmem:[%s169 + $0x18] sm:$0xff]
      %v181 = vld [vmem:[%s169 + $0x20] sm:$0xff]
      %v182 = vld [vmem:[%s169 + $0x28] sm:$0xff]
      %v183 = vld [vmem:[%s169 + $0x30] sm:$0xff]
      %v184 = vld [vmem:[%s169 + $0x38] sm:$0xff]
      %v185 = vld [vmem:[%s169 + $0x40] sm:$0xff]
      %v186 = vld [vmem:[%s169 + $0x48] sm:$0xff]
      %v187 = vld [vmem:[%s169 + $0x50] sm:$0xff]
      %v188 = vld [vmem:[%s169 + $0x58] sm:$0xff]
      %v189 = vld [vmem:[%s169 + $0x60] sm:$0xff]
      %v190 = vld [vmem:[%s169 + $0x68] sm:$0xff]
      %v191 = vld [vmem:[%s1] sm:$0xff]
      %v192 = vld [vmem:[%s1 + $0x8] sm:$0xff]
      %v193 = vld [vmem:[%s1 + $0x10] sm:$0xff]
      %v194 = vld [vmem:[%s1 + $0x18] sm:$0xff]
      %v195 = vld [vmem:[%s1 + $0x20] sm:$0xff]
      %v196 = vld [vmem:[%s1 + $0x28] sm:$0xff]
      %v197 = vld [vmem:[%s1 + $0x30] sm:$0xff]
      %v198 = vld [vmem:[%s1 + $0x38] sm:$0xff]
      %v199 = vld [vmem:[%s1 + $0x40] sm:$0xff]
      %v200 = vld [vmem:[%s1 + $0x48] sm:$0xff]
      %v201 = vld [vmem:[%s1 + $0x50] sm:$0xff]
      %v202 = vld [vmem:[%s1 + $0x58] sm:$0xff]
      %v203 = vld [vmem:[%s1 + $0x60] sm:$0xff]
      %v204 = vld [vmem:[%s1 + $0x68] sm:$0xff]
      %v205 = vld [vmem:[%s1 + $0x70] sm:$0xff]
      %v206 = vld [vmem:[%s1 + $0x78] sm:$0xff]
      %v207 = vld [vmem:[%s1 + $0x80] sm:$0xff]
      %v208 = vld [vmem:[%s1 + $0x88] sm:$0xff]
      %v209 = vld [vmem:[%s1 + $0x90] sm:$0xff]
      %v210 = vld [vmem:[%s1 + $0x98] sm:$0xff]
      %v211 = vld [vmem:[%s1 + $0xa0] sm:$0xff]
      %v212 = vld [vmem:[%s1 + $0xa8] sm:$0xff]
      %v213 = vld [vmem:[%s1 + $0xb0] sm:$0xff]
      %v214 = vld [vmem:[%s1 + $0xb8] sm:$0xff]
      %v215 = vld [vmem:[%s1 + $0xc0] sm:$0xff]
      %v216 = vld [vmem:[%s1 + $0xc8] sm:$0xff]
      %v217 = vld [vmem:[%s1 + $0xd0] sm:$0xff]
      %v218 = vld [vmem:[%s1 + $0xd8] sm:$0xff]
      %v219 = vld [vmem:[%s1 + $0xe0] sm:$0xff]
      %v220 = vld [vmem:[%s1 + $0xe8] sm:$0xff]
      %v221 = vld [vmem:[%s1 + $0xf0] sm:$0xff]
      %v222 = vld [vmem:[%s1 + $0xf8] sm:$0xff]
      %v223 = vld [vmem:[%s1 + $0x100] sm:$0xff]
      %v224 = vld [vmem:[%s1 + $0x108] sm:$0xff]
      %v225 = vld [vmem:[%s1 + $0x110] sm:$0xff]
      %v226 = vld [vmem:[%s1 + $0x118] sm:$0xff]
      %v227 = vld [vmem:[%s1 + $0x120] sm:$0xff]
      %v228 = vld [vmem:[%s1 + $0x128] sm:$0xff]
      %v229 = vld [vmem:[%s1 + $0x130] sm:$0xff]
      %v230 = vld [vmem:[%s1 + $0x138] sm:$0xff]
      %v231 = vld [vmem:[%s1 + $0x140] sm:$0xff]
      %v232 = vld [vmem:[%s1 + $0x148] sm:$0xff]
      %v233 = vld [vmem:[%s1 + $0x150] sm:$0xff]
      %v234 = vld [vmem:[%s1 + $0x158] sm:$0xff]
      %v235 = vld [vmem:[%s1 + $0x160] sm:$0xff]
      %v236 = vld [vmem:[%s1 + $0x168] sm:$0xff]
      %v237 = vld [vmem:[%s1 + $0x170] sm:$0xff]
      %v238 = vld [vmem:[%s1 + $0x178] sm:$0xff]
      %v239 = vld [vmem:[%s1 + $0x180] sm:$0xff]
      %v240 = vld [vmem:[%s1 + $0x188] sm:$0xff]
      %v241 = vld [vmem:[%s1 + $0x190] sm:$0xff]
      %v242 = vld [vmem:[%s1 + $0x198] sm:$0xff]
      %v243 = vld [vmem:[%s1 + $0x1a0] sm:$0xff]
      %v244 = vld [vmem:[%s1 + $0x1a8] sm:$0xff]
      %v245 = vld [vmem:[%s1 + $0x1b0] sm:$0xff]
      %v246 = vld [vmem:[%s1 + $0x1b8] sm:$0xff]
      %v247 = vld [vmem:[%s1 + $0x1c0] sm:$0xff]
      %v248 = vld [vmem:[%s1 + $0x1c8] sm:$0xff]
      %v249 = vld [vmem:[%s1 + $0x1d0] sm:$0xff]
      %v250 = vld [vmem:[%s1 + $0x1d8] sm:$0xff]
      %v251 = vld [vmem:[%s1 + $0x1e0] sm:$0xff]
      %v252 = vld [vmem:[%s1 + $0x1e8] sm:$0xff]
      %v253 = vld [vmem:[%s1 + $0x1f0] sm:$0xff]
      %v254 = vld [vmem:[%s1 + $0x1f8] sm:$0xff]
      %v255 = vld [vmem:[%s1 + $0x200] sm:$0xff]
      %v256 = vld [vmem:[%s1 + $0x208] sm:$0xff]
      %v257 = vld [vmem:[%s1 + $0x210] sm:$0xff]
      %v258 = vld [vmem:[%s1 + $0x218] sm:$0xff]
      %v259 = vld [vmem:[%s1 + $0x220] sm:$0xff]
      %v260 = vld [vmem:[%s1 + $0x228] sm:$0xff]
      %v261 = vld [vmem:[%s1 + $0x230] sm:$0xff]
      %v262 = vld [vmem:[%s1 + $0x238] sm:$0xff]
      %v263 = vld [vmem:[%s1 + $0x240] sm:$0xff]
      %v264 = vld [vmem:[%s1 + $0x248] sm:$0xff]
      %v265 = vld [vmem:[%s1 + $0x250] sm:$0xff]
      %v266 = vld [vmem:[%s1 + $0x258] sm:$0xff]
      %v267 = vld [vmem:[%s1 + $0x260] sm:$0xff]
      %v268 = vld [vmem:[%s1 + $0x268] sm:$0xff]
      %v269 = vld [vmem:[%s1 + $0x270] sm:$0xff]
      %v270 = vld [vmem:[%s1 + $0x278] sm:$0xff]
      %v271 = vld [vmem:[%s1 + $0x280] sm:$0xff]
      %v272 = vld [vmem:[%s1 + $0x288] sm:$0xff]
      %v273 = vld [vmem:[%s1 + $0x290] sm:$0xff]
      %v274 = vld [vmem:[%s1 + $0x298] sm:$0xff]
      %v275 = vld [vmem:[%s1 + $0x2a0] sm:$0xff]
      %v276 = vld [vmem:[%s1 + $0x2a8] sm:$0xff]
      %v277 = vld [vmem:[%s1 + $0x2b0] sm:$0xff]
      %v278 = vld [vmem:[%s1 + $0x2b8] sm:$0xff]
      %v279 = vld [vmem:[%s1 + $0x2c0] sm:$0xff]
      %v280 = vld [vmem:[%s1 + $0x2c8] sm:$0xff]
      %v281 = vld [vmem:[%s1 + $0x2d0] sm:$0xff]
      %v282 = vld [vmem:[%s1 + $0x2d8] sm:$0xff]
      %v283 = vld [vmem:[%s1 + $0x2e0] sm:$0xff]
      %v284 = vld [vmem:[%s1 + $0x2e8] sm:$0xff]
      %v285 = vld [vmem:[%s1 + $0x2f0] sm:$0xff]
      %v286 = vld [vmem:[%s1 + $0x2f8] sm:$0xff]
      %v287 = vld [vmem:[%s1 + $0x300] sm:$0xff]
      %v288 = vld [vmem:[%s1 + $0x308] sm:$0xff]
      %v289 = vld [vmem:[%s2] sm:$0x1]
      %v291 = vlaneseq
      %v292 = vshrl.u32 %v291, 7
      %v293 = vsub.s32 0, %v292
      %v294 = vrot.slane %v289, %v293
      %vm296 = vcmask 130048
      %v298 = vsel %vm296, %v183, 0
      %v301 = vsel %vm296, %v190, 0
      %303 = vmatprep.subr.mxu0 0.0
      %304 = vmatpush1.msra.mxu0 %v191
      %305 = vmatprep.subr.mxu0 0.0
      %306 = vmatpush1.msra.mxu0 %v192
      %307 = vmatprep.subr.mxu0 0.0
      %308 = vmatpush1.msra.mxu0 %v193
      %309 = vmatprep.subr.mxu0 0.0
      %310 = vmatpush1.msra.mxu0 %v194
      %311 = vmatprep.subr.mxu0 0.0
      %312 = vmatpush1.msra.mxu0 %v195
      %313 = vmatprep.subr.mxu0 0.0
      %314 = vmatpush1.msra.mxu0 %v196
      %315 = vmatprep.subr.mxu0 0.0
      %316 = vmatpush1.msra.mxu0 %v197
      %317 = vmatprep.subr.mxu0 0.0
      %318 = vmatpush1.msra.mxu0 %v198
      %319 = vmatprep.subr.mxu0 0.0
      %320 = vmatpush1.msra.mxu0 %v199
      %321 = vmatprep.subr.mxu0 0.0
      %322 = vmatpush1.msra.mxu0 %v200
      %323 = vmatprep.subr.mxu0 0.0
      %324 = vmatpush1.msra.mxu0 %v201
      %325 = vmatprep.subr.mxu0 0.0
      %326 = vmatpush1.msra.mxu0 %v202
      %327 = vmatprep.subr.mxu0 0.0
      %328 = vmatpush1.msra.mxu0 %v203
      %329 = vmatprep.subr.mxu0 0.0
      %330 = vmatpush1.msra.mxu0 %v204
      %331 = vmatprep.subr.mxu0 0.0
      %332 = vmatpush1.msra.mxu0 %v205
      %333 = vmatprep.subr.mxu0 0.0
      %334 = vmatpush1.msra.mxu0 %v206
      %335 = vmatprep.subr.mxu0 0.0
      %336 = vmatpush1.msra.mxu0 %v207
      %337 = vmatprep.subr.mxu0 0.0
      %338 = vmatpush1.msra.mxu0 %v208
      %339 = vmatprep.subr.mxu0 0.0
      %340 = vmatpush1.msra.mxu0 %v209
      %341 = vmatprep.subr.mxu0 0.0
      %342 = vmatpush1.msra.mxu0 %v210
      %343 = vmatprep.subr.mxu0 0.0
      %344 = vmatpush1.msra.mxu0 %v211
      %345 = vmatprep.subr.mxu0 0.0
      %346 = vmatpush1.msra.mxu0 %v212
      %347 = vmatprep.subr.mxu0 0.0
      %348 = vmatpush1.msra.mxu0 %v213
      %349 = vmatprep.subr.mxu0 0.0
      %350 = vmatpush1.msra.mxu0 %v214
      %351 = vmatprep.subr.mxu0 0.0
      %352 = vmatpush1.msra.mxu0 %v215
      %353 = vmatprep.subr.mxu0 0.0
      %354 = vmatpush1.msra.mxu0 %v216
      %355 = vmatprep.subr.mxu0 0.0
      %356 = vmatpush1.msra.mxu0 %v217
      %357 = vmatprep.subr.mxu0 0.0
      %358 = vmatpush1.msra.mxu0 %v218
      %359 = vmatprep.subr.mxu0 0.0
      %360 = vmatpush1.msra.mxu0 %v219
      %361 = vmatprep.subr.mxu0 0.0
      %362 = vmatpush1.msra.mxu0 %v220
      %363 = vmatprep.subr.mxu0 0.0
      %364 = vmatpush1.msra.mxu0 %v221
      %365 = vmatprep.subr.mxu0 0.0
      %366 = vmatpush1.msra.mxu0 %v222
      %367 = vmatprep.mubr.f32.mxu0 %v178
      %368 = vmatmul.mubr.f32.gmra.mrb[0].mxu0 %v177
      %v369 = vpop.f32.mrb[0].mxu0
      %v370 = vadd.f32 %v294, %v369
      %v371 = vpop.f32.mrb[0].mxu0
      %372 = vmatprep.mubr.f32.mxu0 %v185
      %373 = vmatmul.mubr.f32.gmra.mrb[0].mxu0 %v184
      %v374 = vpop.f32.mrb[0].mxu0
      %v375 = vadd.f32 %v294, %v374
      %v376 = vpop.f32.mrb[0].mxu0
      %377 = vdwg.mxu0
      %378 = vmatprep.subr.mxu0 0.0
      %379 = vmatpush1.msra.mxu0 %v223
      %380 = vmatprep.subr.mxu0 0.0
      %381 = vmatpush1.msra.mxu0 %v224
      %382 = vmatprep.subr.mxu0 0.0
      %383 = vmatpush1.msra.mxu0 %v225
      %384 = vmatprep.subr.mxu0 0.0
      %385 = vmatpush1.msra.mxu0 %v226
      %386 = vmatprep.subr.mxu0 0.0
      %387 = vmatpush1.msra.mxu0 %v227
      %388 = vmatprep.subr.mxu0 0.0
      %389 = vmatpush1.msra.mxu0 %v228
      %390 = vmatprep.subr.mxu0 0.0
      %391 = vmatpush1.msra.mxu0 %v229
      %392 = vmatprep.subr.mxu0 0.0
      %393 = vmatpush1.msra.mxu0 %v230
      %394 = vmatprep.subr.mxu0 0.0
      %395 = vmatpush1.msra.mxu0 %v231
      %396 = vmatprep.subr.mxu0 0.0
      %397 = vmatpush1.msra.mxu0 %v232
      %398 = vmatprep.subr.mxu0 0.0
      %399 = vmatpush1.msra.mxu0 %v233
      %400 = vmatprep.subr.mxu0 0.0
      %401 = vmatpush1.msra.mxu0 %v234
      %402 = vmatprep.subr.mxu0 0.0
      %403 = vmatpush1.msra.mxu0 %v235
      %404 = vmatprep.subr.mxu0 0.0
      %405 = vmatpush1.msra.mxu0 %v236
      %406 = vmatprep.subr.mxu0 0.0
      %407 = vmatpush1.msra.mxu0 %v237
      %408 = vmatprep.subr.mxu0 0.0
      %409 = vmatpush1.msra.mxu0 %v238
      %410 = vmatprep.subr.mxu0 0.0
      %411 = vmatpush1.msra.mxu0 %v239
      %412 = vmatprep.subr.mxu0 0.0
      %413 = vmatpush1.msra.mxu0 %v240
      %414 = vmatprep.subr.mxu0 0.0
      %415 = vmatpush1.msra.mxu0 %v241
      %416 = vmatprep.subr.mxu0 0.0
      %417 = vmatpush1.msra.mxu0 %v242
      %418 = vmatprep.subr.mxu0 0.0
      %419 = vmatpush1.msra.mxu0 %v243
      %420 = vmatprep.subr.mxu0 0.0
      %421 = vmatpush1.msra.mxu0 %v244
      %422 = vmatprep.subr.mxu0 0.0
      %423 = vmatpush1.msra.mxu0 %v245
      %424 = vmatprep.subr.mxu0 0.0
      %425 = vmatpush1.msra.mxu0 %v246
      %426 = vmatprep.subr.mxu0 0.0
      %427 = vmatpush1.msra.mxu0 %v247
      %428 = vmatprep.subr.mxu0 0.0
      %429 = vmatpush1.msra.mxu0 %v248
      %430 = vmatprep.subr.mxu0 0.0
      %431 = vmatpush1.msra.mxu0 %v249
      %432 = vmatprep.subr.mxu0 0.0
      %433 = vmatpush1.msra.mxu0 %v250
      %434 = vmatprep.subr.mxu0 0.0
      %435 = vmatpush1.msra.mxu0 %v251
      %436 = vmatprep.subr.mxu0 0.0
      %437 = vmatpush1.msra.mxu0 %v252
      %438 = vmatprep.subr.mxu0 0.0
      %439 = vmatpush1.msra.mxu0 %v253
      %440 = vmatprep.subr.mxu0 0.0
      %441 = vmatpush1.msra.mxu0 %v254
      %442 = vmatprep.mubr.f32.mxu0 %v180
      %443 = vmatmul.mubr.f32.gmra.mrb[0].mxu0 %v179
      %v444 = vpop.f32.mrb[0].mxu0
      %v445 = vadd.f32 %v370, %v444
      %v446 = vpop.f32.mrb[0].mxu0
      %447 = vmatprep.mubr.f32.mxu0 %v187
      %448 = vmatmul.mubr.f32.gmra.mrb[0].mxu0 %v186
      %v449 = vpop.f32.mrb[0].mxu0
      %v450 = vadd.f32 %v375, %v449
      %v451 = vpop.f32.mrb[0].mxu0
      %452 = vdwg.mxu0
      %453 = vmatprep.subr.mxu0 0.0
      %454 = vmatpush1.msra.mxu0 %v255
      %455 = vmatprep.subr.mxu0 0.0
      %456 = vmatpush1.msra.mxu0 %v256
      %457 = vmatprep.subr.mxu0 0.0
      %458 = vmatpush1.msra.mxu0 %v257
      %459 = vmatprep.subr.mxu0 0.0
      %460 = vmatpush1.msra.mxu0 %v258
      %461 = vmatprep.subr.mxu0 0.0
      %462 = vmatpush1.msra.mxu0 %v259
      %463 = vmatprep.subr.mxu0 0.0
      %464 = vmatpush1.msra.mxu0 %v260
      %465 = vmatprep.subr.mxu0 0.0
      %466 = vmatpush1.msra.mxu0 %v261
      %467 = vmatprep.subr.mxu0 0.0
      %468 = vmatpush1.msra.mxu0 %v262
      %469 = vmatprep.subr.mxu0 0.0
      %470 = vmatpush1.msra.mxu0 %v263
      %471 = vmatprep.subr.mxu0 0.0
      %472 = vmatpush1.msra.mxu0 %v264
      %473 = vmatprep.subr.mxu0 0.0
      %474 = vmatpush1.msra.mxu0 %v265
      %475 = vmatprep.subr.mxu0 0.0
      %476 = vmatpush1.msra.mxu0 %v266
      %477 = vmatprep.subr.mxu0 0.0
      %478 = vmatpush1.msra.mxu0 %v267
      %479 = vmatprep.subr.mxu0 0.0
      %480 = vmatpush1.msra.mxu0 %v268
      %481 = vmatprep.subr.mxu0 0.0
      %482 = vmatpush1.msra.mxu0 %v269
      %483 = vmatprep.subr.mxu0 0.0
      %484 = vmatpush1.msra.mxu0 %v270
      %485 = vmatprep.subr.mxu0 0.0
      %486 = vmatpush1.msra.mxu0 %v271
      %487 = vmatprep.subr.mxu0 0.0
      %488 = vmatpush1.msra.mxu0 %v272
      %489 = vmatprep.subr.mxu0 0.0
      %490 = vmatpush1.msra.mxu0 %v273
      %491 = vmatprep.subr.mxu0 0.0
      %492 = vmatpush1.msra.mxu0 %v274
      %493 = vmatprep.subr.mxu0 0.0
      %494 = vmatpush1.msra.mxu0 %v275
      %495 = vmatprep.subr.mxu0 0.0
      %496 = vmatpush1.msra.mxu0 %v276
      %497 = vmatprep.subr.mxu0 0.0
      %498 = vmatpush1.msra.mxu0 %v277
      %499 = vmatprep.subr.mxu0 0.0
      %500 = vmatpush1.msra.mxu0 %v278
      %501 = vmatprep.subr.mxu0 0.0
      %502 = vmatpush1.msra.mxu0 %v279
      %503 = vmatprep.subr.mxu0 0.0
      %504 = vmatpush1.msra.mxu0 %v280
      %505 = vmatprep.subr.mxu0 0.0
      %506 = vmatpush1.msra.mxu0 %v281
      %507 = vmatprep.subr.mxu0 0.0
      %508 = vmatpush1.msra.mxu0 %v282
      %509 = vmatprep.subr.mxu0 0.0
      %510 = vmatpush1.msra.mxu0 %v283
      %511 = vmatprep.subr.mxu0 0.0
      %512 = vmatpush1.msra.mxu0 %v284
      %513 = vmatprep.subr.mxu0 0.0
      %514 = vmatpush1.msra.mxu0 %v285
      %515 = vmatprep.subr.mxu0 0.0
      %516 = vmatpush1.msra.mxu0 %v286
      %517 = vmatprep.mubr.f32.mxu0 %v182
      %518 = vmatmul.mubr.f32.gmra.mrb[0].mxu0 %v181
      %v519 = vpop.f32.mrb[0].mxu0
      %v520 = vadd.f32 %v445, %v519
      %v521 = vpop.f32.mrb[0].mxu0
      %522 = vmatprep.mubr.f32.mxu0 %v189
      %523 = vmatmul.mubr.f32.gmra.mrb[0].mxu0 %v188
      %v524 = vpop.f32.mrb[0].mxu0
      %v525 = vadd.f32 %v450, %v524
      %v526 = vpop.f32.mrb[0].mxu0
      %527 = vdwg.mxu0
      %528 = vmatprep.subr.mxu0 0.0
      %529 = vmatpush1.msra.mxu0 %v287
      %530 = vmatprep.subr.mxu0 0.0
      %531 = vmatpush1.msra.mxu0 %v288
      %532 = vmatprep.subr.mxu0 0.0
      %533 = vmatpush1.msra.mxu0 0.0
      %534 = vmatprep.subr.mxu0 0.0
      %535 = vmatpush1.msra.mxu0 0.0
      %536 = vmatprep.subr.mxu0 0.0
      %537 = vmatpush1.msra.mxu0 0.0
      %538 = vmatprep.subr.mxu0 0.0
      %539 = vmatpush1.msra.mxu0 0.0
      %540 = vmatprep.subr.mxu0 0.0
      %541 = vmatpush1.msra.mxu0 0.0
      %542 = vmatprep.subr.mxu0 0.0
      %543 = vmatpush1.msra.mxu0 0.0
      %544 = vmatprep.subr.mxu0 0.0
      %545 = vmatpush1.msra.mxu0 0.0
      %546 = vmatprep.subr.mxu0 0.0
      %547 = vmatpush1.msra.mxu0 0.0
      %548 = vmatprep.subr.mxu0 0.0
      %549 = vmatpush1.msra.mxu0 0.0
      %550 = vmatprep.subr.mxu0 0.0
      %551 = vmatpush1.msra.mxu0 0.0
      %552 = vmatprep.subr.mxu0 0.0
      %553 = vmatpush1.msra.mxu0 0.0
      %554 = vmatprep.subr.mxu0 0.0
      %555 = vmatpush1.msra.mxu0 0.0
      %556 = vmatprep.subr.mxu0 0.0
      %557 = vmatpush1.msra.mxu0 0.0
      %558 = vmatprep.subr.mxu0 0.0
      %559 = vmatpush1.msra.mxu0 0.0
      %560 = vmatprep.subr.mxu0 0.0
      %561 = vmatpush1.msra.mxu0 0.0
      %562 = vmatprep.subr.mxu0 0.0
      %563 = vmatpush1.msra.mxu0 0.0
      %564 = vmatprep.subr.mxu0 0.0
      %565 = vmatpush1.msra.mxu0 0.0
      %566 = vmatprep.subr.mxu0 0.0
      %567 = vmatpush1.msra.mxu0 0.0
      %568 = vmatprep.subr.mxu0 0.0
      %569 = vmatpush1.msra.mxu0 0.0
      %570 = vmatprep.subr.mxu0 0.0
      %571 = vmatpush1.msra.mxu0 0.0
      %572 = vmatprep.subr.mxu0 0.0
      %573 = vmatpush1.msra.mxu0 0.0
      %574 = vmatprep.subr.mxu0 0.0
      %575 = vmatpush1.msra.mxu0 0.0
      %576 = vmatprep.subr.mxu0 0.0
      %577 = vmatpush1.msra.mxu0 0.0
      %578 = vmatprep.subr.mxu0 0.0
      %579 = vmatpush1.msra.mxu0 0.0
      %580 = vmatprep.subr.mxu0 0.0
      %581 = vmatpush1.msra.mxu0 0.0
      %582 = vmatprep.subr.mxu0 0.0
      %583 = vmatpush1.msra.mxu0 0.0
      %584 = vmatprep.subr.mxu0 0.0
      %585 = vmatpush1.msra.mxu0 0.0
      %586 = vmatprep.subr.mxu0 0.0
      %587 = vmatpush1.msra.mxu0 0.0
      %588 = vmatprep.subr.mxu0 0.0
      %589 = vmatpush1.msra.mxu0 0.0
      %590 = vmatprep.subr.mxu0 0.0
      %591 = vmatpush1.msra.mxu0 0.0
      %592 = vmatprep.mubr.f32.mxu0 0.0
      %593 = vmatmul.mubr.f32.gmra.mrb[0].mxu0 %v298
      %v594 = vpop.f32.mrb[0].mxu0
      %v595 = vadd.f32 %v520, %v594
      %v596 = vpop.f32.mrb[0].mxu0
      %597 = vmatprep.mubr.f32.mxu0 0.0
      %598 = vmatmul.mubr.f32.gmra.mrb[0].mxu0 %v301
      %v599 = vpop.f32.mrb[0].mxu0
      %v600 = vadd.f32 %v525, %v599
      %v601 = vpop.f32.mrb[0].mxu0
      %602 = vdwg.mxu0
      %603 = vmax.xlane.f32.xlu0 %v595
      %v604 = vpop.xlane.xlu0 %603
      %605 = vmax.xlane.f32.xlu0 %v600
      %v606 = vpop.xlane.xlu0 %605
      %v607 = vsub.f32 %v595, %v604
      %v608 = vsub.f32 %v600, %v606
      %v609 = vmul.f32 %v607, 1.442695
      %v610 = vpow.pop %v609
      %v611 = vmul.f32 %v608, 1.442695
      %v612 = vpow.pop %v611
      %613 = vadd.xlane.f32.xlu0 %v610
      %v614 = vpop.xlane.xlu0 %613
      %615 = vadd.xlane.f32.xlu0 %v612
      %v616 = vpop.xlane.xlu0 %615
      %v617 = vlog2.pop %v614
      %v618 = vmul.f32 %v617, 0.6931472
      %v619 = vlog2.pop %v616
      %v620 = vmul.f32 %v619, 0.6931472
      %v621 = vsub.f32 %v607, %v618
      %v622 = vsub.f32 %v608, %v620
      %623 = vst [vmem:[%s175] sm:$0xff] %v621
      %624 = vst [vmem:[%s175 + $0x8] sm:$0xff] %v622
      %s625 = smul.u32 2, %s14
      %p626 = scmp.lt.s32.totalorder %s625, 3
      %s627 = scalar_select %p626, %s625, 3
      %s628 = smul.addr %s627, 8
      %s629 = scalar_lea.vmem %s3, %s628
      // Predicated region
      $region33: #{net_forward.1} parent=31 // pred_check
        %p630 = pneg %p100
      $region34: #{net_forward.1} parent=31 // pred_check_branch
        %632 = sbr.rel (%p630) target = $region36
      $region35: #{net_forward.1} parent=31 // pred_region
        %s633 = smul.u32 2, %s14
      $region36: #{net_forward.1} parent=31 // pred_fallthru
        _
    $region32: #{net_forward.1} parent=5 // pred_fallthru
      _
    %p634 = scmp.le.s32.totalorder 2, %s9
    // Predicated region
    $region37: #{net_forward.1} parent=5 // pred_check
      %p635 = pneg %p634
    $region38: #{net_forward.1} parent=5 // pred_check_branch
      %637 = sbr.rel (%p635) target = $region40
    $region39: #{net_forward.1} parent=5 // pred_region
      %s638 = ssub.s32 %s9, 2
      // Predicated region
      $region41: #{net_forward.1} parent=39 // pred_check
        %p639 = pneg %p106
      $region42: #{net_forward.1} parent=39 // pred_check_branch
        %641 = sbr.rel (%p639) target = $region44
      $region43: #{net_forward.1} parent=39 // pred_region
        %s642 = smul.u32 2, %s15
        %p643 = scmp.lt.s32.totalorder %s642, 3
        %s644 = scalar_select %p643, %s642, 3
        %s645 = smul.addr %s644, 8
        %s646 = scalar_lea.vmem %s3, %s645
      $region44: #{net_forward.1} parent=39 // pred_fallthru
        _
    $region40: #{net_forward.1} parent=5 // pred_fallthru
      _
  $region6: #{net_forward.1} parent=0 // loop_footer
    %s13 = sadd.s32 1, %s9
  $region7: #{net_forward.1} parent=0 // loop_footer_branch
    %8 = sbr.rel target = $region3
  $region8: #{net_forward.1} parent=0 // loop_exit
    _

</llo_original>
